<compile_context>
chip_gen: v6e
topology: v6e:2x2x1
jax: 0.10.0
libtpu: 0.0.40
codegen_flags: <defaults>
</compile_context>

<pallas_src>
import numpy as np
import jax
import jax.numpy as jnp
from jax.experimental import pallas as pl
from jax.experimental.pallas import tpu as pltpu

FILTER_SIZES = (2, 3, 4)
NUM_FILTERS = 3
NUM_CLASSES = 2
VOCAB_SIZE = 20
EMBED_SIZE = 32
BATCH = 2
SEQ_LEN = 8

KMIN = min(FILTER_SIZES)
KMAX = max(FILTER_SIZES)

KP = 128     # padded contraction dim (KMAX * E = 4*32 = 128 -> exactly one MXU K tile)
FP = 128     # padded filter lane width (9 real filter lanes: 3 sizes x 3 filters)
CP = 128     # padded class lane width (2 real classes)
NEG = -1e30  # additive mask for windows invalid for a given filter-size group


def textcnn_kernel(x_ref, w_ref, b_ref, fw_ref, fb_ref, mask_ref, out_ref):
    """Per batch block: 1 conv matmul -> window mask -> max-pool -> bias+ReLU -> 1 FC matmul.

    x_ref    : (1, nwin*BT, KP) bf16  merged im2col (window-major, batch-minor rows)
    w_ref    : (KP, FP)         bf16  all 9 filters, zero-extended to KMAX*E contraction rows
    b_ref    : (1, FP)          f32   conv biases (padded lanes 0)
    fw_ref   : (FP, CP)         bf16  packed FC weight (rows align with conv filter lanes)
    fb_ref   : (1, CP)          f32   FC bias (padded lanes 0)
    mask_ref : (nwin, 1, FP)    f32   0 on valid (window, filter-group) pairs, -1e30 otherwise
    out_ref  : (1, BT, CP)      f32   logits (padded class lanes are exactly 0)
    """
    bt = out_ref.shape[1]
    x = x_ref[0]                                            # (nwin*bt, KP)
    nwin = x.shape[0] // bt

    # One lane-dense MXU matmul covers every filter size / filter.
    conv = jnp.dot(x, w_ref[...], preferred_element_type=jnp.float32)   # (nwin*bt, FP) f32

    # Mask windows that would read zero-padded timesteps (k=3 / k=4 groups), then global
    # max-pool over the window axis (compiler emits a log-depth tree of VPU maxes).
    conv = conv.reshape(nwin, bt, conv.shape[-1]) + mask_ref[...]
    pooled = jnp.max(conv, axis=0)                          # (bt, FP)

    # Bias + ReLU after pooling: max_t relu(c_t + b) == relu(max_t c_t + b).
    pooled = jnp.maximum(pooled + b_ref[...], 0.0)

    # Single packed FC matmul (no concat needed): (bt, FP) @ (FP, CP).
    logits = jnp.dot(pooled.astype(fw_ref.dtype), fw_ref[...],
                     preferred_element_type=jnp.float32)
    out_ref[0] = logits + fb_ref[...]                       # full (8,128)-tile store


def _choose_bt(batch):
    """Sublane-aligned batch tile: whole (padded) batch at toy sizes, 128 rows when large."""
    bp = ((batch + 7) // 8) * 8
    return bp if bp <= 128 else 128


def _im2col_merged(emb_p, bt):
    """(BP, L, E) f32 -> (BP//bt, nwin*bt, KP) bf16, window-major / batch-minor rows per block."""
    BP, L, E = emb_p.shape
    nb = BP // bt
    nwin = L - KMIN + 1
    # Pad the sequence with KMAX-KMIN zero timesteps so every window spans KMAX steps.
    seq = jnp.pad(emb_p, ((0, 0), (0, KMAX - KMIN), (0, 0)))
    win = jnp.stack(
        [seq[:, t:t + KMAX, :].reshape(BP, KMAX * E) for t in range(nwin)], axis=1
    )                                                       # (BP, nwin, KMAX*E)
    win = win.reshape(nb, bt, nwin, KMAX * E).transpose(0, 2, 1, 3)
    win = win.reshape(nb, nwin * bt, KMAX * E)
    win = jnp.pad(win, ((0, 0), (0, 0), (0, KP - KMAX * E)))
    return win.astype(jnp.bfloat16)


def _pack_params(params):
    """Host-side packing: one (KP, FP) conv weight, one (FP, CP) FC weight, bf16 operands."""
    F, E = NUM_FILTERS, EMBED_SIZE
    w_big = jnp.zeros((KP, FP), jnp.float32)
    b_big = jnp.zeros((1, FP), jnp.float32)
    fw_big = jnp.zeros((FP, CP), jnp.float32)
    for g, k in enumerate(FILTER_SIZES):
        w = params["conv_w"][g].reshape(F, k * E).T                     # (k*E, F)
        w_big = w_big.at[:k * E, g * F:(g + 1) * F].set(w)              # zero-extend to KMAX*E
        b_big = b_big.at[0, g * F:(g + 1) * F].set(params["conv_b"][g])
        fw = params["fc_w"][:, g * F:(g + 1) * F].T                     # (F, C)
        fw_big = fw_big.at[g * F:(g + 1) * F, :NUM_CLASSES].set(fw)
    fb = jnp.pad(params["fc_b"].reshape(1, -1), ((0, 0), (0, CP - NUM_CLASSES)))
    return w_big.astype(jnp.bfloat16), b_big, fw_big.astype(jnp.bfloat16), fb


def _make_window_mask(nwin, seq_len):
    """(nwin, 1, FP) additive mask: -1e30 on (window, filter-lane) pairs whose window would
    read zero-padded timesteps for that filter size; 0 elsewhere (incl. padded lanes)."""
    m = np.zeros((nwin, 1, FP), np.float32)
    for g, k in enumerate(FILTER_SIZES):
        last_valid = seq_len - k                 # valid window starts: 0 .. seq_len-k
        if last_valid + 1 < nwin:
            m[last_valid + 1:, 0, g * NUM_FILTERS:(g + 1) * NUM_FILTERS] = NEG
    return jnp.asarray(m)


def textcnn_forward(token_ids, params):
    # Embedding lookup (gather) kept in plain JAX at these sizes.
    # TODO(synk): at realistic batch/seq, pass token_ids via scalar prefetch and do the
    # gather (VMEM-resident 20x32 table / one-hot matmul) + window formation inside the
    # kernel to remove the remaining im2col HBM read amplification entirely.
    emb = jnp.take(params["embedding"], token_ids, axis=0)              # (B, L, E) f32
    B, L, E = emb.shape

    BT = _choose_bt(B)                                                  # big M tile at real batch
    BP = ((B + BT - 1) // BT) * BT
    nb = BP // BT
    nwin = L - KMIN + 1

    emb_p = jnp.pad(emb, ((0, BP - B), (0, 0), (0, 0)))
    x = _im2col_merged(emb_p, BT)                                       # (nb, nwin*BT, KP) bf16
    w_big, b_big, fw_big, fb = _pack_params(params)
    mask = _make_window_mask(nwin, L)

    # Explicit VMEM budget: double-buffered x block + weights + output, with headroom.
    # Stays well under v7x's 64 MiB scoped VMEM even at BT=128 / long sequences in bf16.
    block_bytes = (nwin * BT * KP * 2            # x block (bf16)
                   + KP * FP * 2 + FP * CP * 2   # packed weights (bf16)
                   + (FP + CP + nwin * FP) * 4   # biases + mask (f32)
                   + BT * CP * 4)                # logits block (f32)
    vmem_limit = int(min(max(2 * 2 * block_bytes, 16 << 20), 48 << 20))

    # TODO(synk): grid-invariant weight inputs could use pipeline_mode=pl.Buffered(1) to
    # drop their second pipeline buffer; skipped here (few-KB VMEM win at these sizes).
    in_specs = [
        pl.BlockSpec((1, nwin * BT, KP), lambda i: (i, 0, 0)),
        pl.BlockSpec((KP, FP), lambda i: (0, 0)),
        pl.BlockSpec((1, FP), lambda i: (0, 0)),
        pl.BlockSpec((FP, CP), lambda i: (0, 0)),
        pl.BlockSpec((1, CP), lambda i: (0, 0)),
        pl.BlockSpec((nwin, 1, FP), lambda i: (0, 0, 0)),
    ]

    out = pl.pallas_call(
        textcnn_kernel,
        out_shape=jax.ShapeDtypeStruct((nb, BT, CP), jnp.float32),
        grid=(nb,),
        in_specs=in_specs,
        out_specs=pl.BlockSpec((1, BT, CP), lambda i: (i, 0, 0)),
        compiler_params=pltpu.CompilerParams(
            dimension_semantics=("parallel",),
            vmem_limit_bytes=vmem_limit),
    )(x, w_big, b_big, fw_big, fb, mask)

    return out.reshape(BP, CP)[:B, :NUM_CLASSES]


def reference_forward(token_ids, params):
    """Pure-JAX f32 reference matching the PyTorch forward (dropout = identity)."""
    emb = params["embedding"][token_ids]                                # (B, L, E)
    B, L, E = emb.shape
    feats = []
    for k, w, b in zip(FILTER_SIZES, params["conv_w"], params["conv_b"]):
        outs = []
        for t in range(L - k + 1):
            window = emb[:, t:t + k, :].reshape(B, -1)                  # (B, k*E)
            outs.append(window @ w.reshape(w.shape[0], -1).T + b)
        conv = jnp.stack(outs, axis=-1)                                 # (B, F, nwin)
        feats.append(jnp.max(jax.nn.relu(conv), axis=-1))               # (B, F)
    feat = jnp.concatenate(feats, axis=1)                               # (B, F*3)
    return feat @ params["fc_w"].T + params["fc_b"]


def init_params(key):
    keys = jax.random.split(key, 3 + 2 * len(FILTER_SIZES))
    params = {
        "embedding": jax.random.normal(keys[0], (VOCAB_SIZE, EMBED_SIZE), jnp.float32) * 0.1,
        "conv_w": [],
        "conv_b": [],
        "fc_w": jax.random.normal(keys[1], (NUM_CLASSES, NUM_FILTERS * len(FILTER_SIZES)),
                                  jnp.float32) * 0.1,
        "fc_b": jax.random.normal(keys[2], (NUM_CLASSES,), jnp.float32) * 0.1,
    }
    for i, k in enumerate(FILTER_SIZES):
        params["conv_w"].append(
            jax.random.normal(keys[3 + 2 * i], (NUM_FILTERS, k, EMBED_SIZE), jnp.float32) * 0.1)
        params["conv_b"].append(
            jax.random.normal(keys[4 + 2 * i], (NUM_FILTERS,), jnp.float32) * 0.1)
    return params


if __name__ == "__main__":
    key = jax.random.PRNGKey(0)
    pkey, xkey = jax.random.split(key)
    params = init_params(pkey)
    token_ids = jax.random.randint(xkey, (BATCH, SEQ_LEN), 0, VOCAB_SIZE, dtype=jnp.int32)

    out = jax.block_until_ready(textcnn_forward(token_ids, params))
    ref = jax.block_until_ready(reference_forward(token_ids, params))

    assert out.shape == (BATCH, NUM_CLASSES)
    # Matmul operands are bf16 (f32 MXU accumulation) -> compare at bf16-appropriate tolerance.
    assert jnp.allclose(out, ref, atol=1e-2, rtol=1e-2), (out, ref)
    print("KERNEL_OK")
</pallas_src>

<mosaic_0001>
module attributes {stable_mosaic.version = 11 : i64} {
  func.func @textcnn_kernel(%arg0: i32, %arg1: memref<1x56x128xbf16, #tpu.memory_space<vmem>>, %arg2: memref<128x128xbf16, #tpu.memory_space<vmem>>, %arg3: memref<1x128xf32, #tpu.memory_space<vmem>>, %arg4: memref<128x128xbf16, #tpu.memory_space<vmem>>, %arg5: memref<1x128xf32, #tpu.memory_space<vmem>>, %arg6: memref<7x1x128xf32, #tpu.memory_space<vmem>>, %arg7: memref<1x8x128xf32, #tpu.memory_space<vmem>>) attributes {dimension_semantics = [#tpu.dimension_semantics<parallel>], iteration_bounds = array<i64: 1>, scalar_prefetch = 0 : i64, scratch_operands = 0 : i64, tpu.core_type = #tpu.core_type<tc>, window_params = [{transform_indices = @transform_0, window_bounds = array<i64: 1, 56, 128>}, {pipeline_mode = #tpu.pipeline_mode<synchronous>, transform_indices = @transform_1, window_bounds = array<i64: 128, 128>}, {pipeline_mode = #tpu.pipeline_mode<synchronous>, transform_indices = @transform_2, window_bounds = array<i64: 1, 128>}, {pipeline_mode = #tpu.pipeline_mode<synchronous>, transform_indices = @transform_3, window_bounds = array<i64: 128, 128>}, {pipeline_mode = #tpu.pipeline_mode<synchronous>, transform_indices = @transform_4, window_bounds = array<i64: 1, 128>}, {pipeline_mode = #tpu.pipeline_mode<synchronous>, transform_indices = @transform_5, window_bounds = array<i64: 7, 1, 128>}, {transform_indices = @transform_6, window_bounds = array<i64: 1, 8, 128>}]} {
    %c0 = arith.constant 0 : index
    %c0_0 = arith.constant 0 : index
    %c0_1 = arith.constant 0 : index
    %0 = vector.load %arg1[%c0, %c0_0, %c0_1] : memref<1x56x128xbf16, #tpu.memory_space<vmem>>, vector<1x56x128xbf16>
    %1 = vector.shape_cast %0 : vector<1x56x128xbf16> to vector<56x128xbf16>
    %c0_2 = arith.constant 0 : index
    %c0_3 = arith.constant 0 : index
    %2 = vector.load %arg2[%c0_2, %c0_3] : memref<128x128xbf16, #tpu.memory_space<vmem>>, vector<128x128xbf16>
    %cst = arith.constant dense<0.000000e+00> : vector<56x128xf32>
    %3 = tpu.matmul %1, %2, %cst {dimension_numbers = #tpu.dot_dimension_numbers<[1], [0], [0], [1], [0, 0, 1, 1], [], []>} : vector<56x128xbf16>, vector<128x128xbf16>, vector<56x128xf32> -> vector<56x128xf32>
    %4 = vector.shape_cast %3 : vector<56x128xf32> to vector<7x8x128xf32>
    %c0_4 = arith.constant 0 : index
    %c0_5 = arith.constant 0 : index
    %c0_6 = arith.constant 0 : index
    %5 = vector.load %arg6[%c0_4, %c0_5, %c0_6] : memref<7x1x128xf32, #tpu.memory_space<vmem>>, vector<7x1x128xf32>
    %6 = vector.broadcast %5 : vector<7x1x128xf32> to vector<7x8x128xf32>
    %7 = arith.addf %4, %6 : vector<7x8x128xf32>
    %cst_7 = arith.constant dense<0xFF800000> : vector<8x128xf32>
    %8 = vector.multi_reduction <maximumf>, %7, %cst_7 [0] : vector<7x8x128xf32> to vector<8x128xf32>
    %c0_8 = arith.constant 0 : index
    %c0_9 = arith.constant 0 : index
    %9 = vector.load %arg3[%c0_8, %c0_9] : memref<1x128xf32, #tpu.memory_space<vmem>>, vector<1x128xf32>
    %10 = vector.broadcast %9 : vector<1x128xf32> to vector<8x128xf32>
    %11 = arith.addf %8, %10 : vector<8x128xf32>
    %cst_10 = arith.constant 0.000000e+00 : f32
    %12 = vector.broadcast %cst_10 : f32 to vector<8x128xf32>
    %13 = arith.maximumf %11, %12 : vector<8x128xf32>
    %14 = arith.truncf %13 : vector<8x128xf32> to vector<8x128xbf16>
    %c0_11 = arith.constant 0 : index
    %c0_12 = arith.constant 0 : index
    %15 = vector.load %arg4[%c0_11, %c0_12] : memref<128x128xbf16, #tpu.memory_space<vmem>>, vector<128x128xbf16>
    %cst_13 = arith.constant dense<0.000000e+00> : vector<8x128xf32>
    %16 = tpu.matmul %14, %15, %cst_13 {dimension_numbers = #tpu.dot_dimension_numbers<[1], [0], [0], [1], [0, 0, 1, 1], [], []>} : vector<8x128xbf16>, vector<128x128xbf16>, vector<8x128xf32> -> vector<8x128xf32>
    %c0_14 = arith.constant 0 : index
    %c0_15 = arith.constant 0 : index
    %17 = vector.load %arg5[%c0_14, %c0_15] : memref<1x128xf32, #tpu.memory_space<vmem>>, vector<1x128xf32>
    %18 = vector.broadcast %17 : vector<1x128xf32> to vector<8x128xf32>
    %19 = arith.addf %16, %18 : vector<8x128xf32>
    %c0_16 = arith.constant 0 : index
    %c0_17 = arith.constant 0 : index
    %c0_18 = arith.constant 0 : index
    %20 = vector.load %arg7[%c0_16, %c0_17, %c0_18] : memref<1x8x128xf32, #tpu.memory_space<vmem>>, vector<1x8x128xf32>
    %21 = vector.shape_cast %20 : vector<1x8x128xf32> to vector<8x128xf32>
    %22 = vector.shape_cast %19 : vector<8x128xf32> to vector<1x8x128xf32>
    tpu.vector_store %arg7[%c0_16, %c0_17, %c0_18], %22 {strides = array<i32>} : memref<1x8x128xf32, #tpu.memory_space<vmem>>, vector<1x8x128xf32>,
    return
  }
  func.func @transform_0(%arg0: i32) -> (i32, i32, i32) {
    %c0_i32 = arith.constant 0 : i32
    %c0_i32_0 = arith.constant 0 : i32
    %c0_i32_1 = arith.constant 0 : i32
    return %arg0, %c0_i32, %c0_i32_0 : i32, i32, i32
  }
  func.func @transform_1(%arg0: i32) -> (i32, i32) {
    %c0_i32 = arith.constant 0 : i32
    %c0_i32_0 = arith.constant 0 : i32
    %c0_i32_1 = arith.constant 0 : i32
    return %c0_i32, %c0_i32_0 : i32, i32
  }
  func.func @transform_2(%arg0: i32) -> (i32, i32) {
    %c0_i32 = arith.constant 0 : i32
    %c0_i32_0 = arith.constant 0 : i32
    %c0_i32_1 = arith.constant 0 : i32
    return %c0_i32, %c0_i32_0 : i32, i32
  }
  func.func @transform_3(%arg0: i32) -> (i32, i32) {
    %c0_i32 = arith.constant 0 : i32
    %c0_i32_0 = arith.constant 0 : i32
    %c0_i32_1 = arith.constant 0 : i32
    return %c0_i32, %c0_i32_0 : i32, i32
  }
  func.func @transform_4(%arg0: i32) -> (i32, i32) {
    %c0_i32 = arith.constant 0 : i32
    %c0_i32_0 = arith.constant 0 : i32
    %c0_i32_1 = arith.constant 0 : i32
    return %c0_i32, %c0_i32_0 : i32, i32
  }
  func.func @transform_5(%arg0: i32) -> (i32, i32, i32) {
    %c0_i32 = arith.constant 0 : i32
    %c0_i32_0 = arith.constant 0 : i32
    %c0_i32_1 = arith.constant 0 : i32
    %c0_i32_2 = arith.constant 0 : i32
    return %c0_i32, %c0_i32_0, %c0_i32_1 : i32, i32, i32
  }
  func.func @transform_6(%arg0: i32) -> (i32, i32, i32) {
    %c0_i32 = arith.constant 0 : i32
    %c0_i32_0 = arith.constant 0 : i32
    %c0_i32_1 = arith.constant 0 : i32
    return %arg0, %c0_i32, %c0_i32_0 : i32, i32, i32
  }
}

</mosaic_0001>

<llo_original>
// kernel: tpu_custom_call.1
$region0: #{tpu_custom_call.1}
  #allocation0 [shape = 'u32[]', space=smem, size = 0x4, offset = 0x4, fixed_abs, tag = 'smem constant byte address 0x4 - core index']
  #allocation1 [shape = 'u32[144,128]{1,0:T(1,128)}', space=vmem, size = 0x12000, scoped, tag = 'internal scratch']
  %s0 = inlined_call_operand.hbm [shape: bf16[1,56,128], index: 0, kind: input, shape index: {}]
  %s1 = inlined_call_operand.hbm [shape: bf16[128,128], index: 1, kind: input, shape index: {}]
  %s2 = inlined_call_operand.vmem [shape: f32[1,128], index: 2, kind: input, shape index: {}]
  %s3 = inlined_call_operand.hbm [shape: bf16[128,128], index: 3, kind: input, shape index: {}]
  %s4 = inlined_call_operand.vmem [shape: f32[1,128], index: 4, kind: input, shape index: {}]
  %s5 = inlined_call_operand.vmem [shape: f32[7,1,128], index: 5, kind: input, shape index: {}]
  %s6 = inlined_call_operand.hbm [shape: f32[1,8,128], index: 6, kind: output, shape index: {}]
  %s7 = sld [smem:[#allocation0]]
  $region46: #{tpu_custom_call.1} parent=0
    _
  %s9 = ssub.s32 1, %s7
  %s10 = scalar_select 0, %s9, %s7
  $region1: #{tpu_custom_call.1} parent=0
    #allocation2 [shape = 'u8[14336]{0}', space=vmem, size = 0x3800, scoped, tag = 'input window, operand 0, single buffered']
    #allocation3 [shape = 's32[1]{0}', space=sflag, size = 0x4, scoped, tag = 'scoped memory for tpu_custom_call.1']
    #allocation4 [shape = 's32[1]{0}', space=sflag, size = 0x4, scoped, tag = 'scoped memory for tpu_custom_call.1']
    #allocation5 [shape = 'u8[32768]{0}', space=vmem, size = 0x8000, scoped, tag = 'input window, operand 1, single buffered']
    #allocation6 [shape = 's32[1]{0}', space=sflag, size = 0x4, scoped, tag = 'scoped memory for tpu_custom_call.1']
    #allocation7 [shape = 'u8[32768]{0}', space=vmem, size = 0x8000, scoped, tag = 'input window, operand 3, single buffered']
    #allocation8 [shape = 'u8[4096]{0}', space=vmem, size = 0x1000, scoped, tag = 'output window, operand 0, single buffered']
    %11 = vsyncpa [#allocation3], 0
    %12 = vsyncpa [#allocation6], 0
    %13 = vsyncpa [#allocation4], 0
    // Predicated region
    $region2: #{tpu_custom_call.1} parent=1 // pred_check
      _
    $region3: #{tpu_custom_call.1} parent=1 // pred_check_branch
      %15 = sbr.rel (0) target = $region5
    $region4: #{tpu_custom_call.1} parent=1 // pred_region
      %s17 = ssub.s32 448, 448
      %18 = vsyncadd [#allocation3], %s17
      %s19 = sshll.u32 [#allocation2], 4
      %s20 = int_to_ptr.vmem [resolvable:$true] %s19
      %25 = dma.hbm_to_vmem [thread:$0]  %s0, 448, %s20, [#allocation3], 64, 64, 4
    $region5: #{tpu_custom_call.1} parent=1 // pred_fallthru
      _
    // Predicated region
    $region6: #{tpu_custom_call.1} parent=1 // pred_check
      _
    $region7: #{tpu_custom_call.1} parent=1 // pred_check_branch
      %27 = sbr.rel (0) target = $region9
    $region8: #{tpu_custom_call.1} parent=1 // pred_region
      %s29 = ssub.s32 1024, 1024
      %30 = vsyncadd [#allocation6], %s29
      %s31 = sshll.u32 [#allocation5], 4
      %s32 = int_to_ptr.vmem [resolvable:$true] %s31
      %37 = dma.hbm_to_vmem [thread:$0]  %s1, 1024, %s32, [#allocation6], 64, 64, 4
    $region9: #{tpu_custom_call.1} parent=1 // pred_fallthru
      _
    // Predicated region
    $region10: #{tpu_custom_call.1} parent=1 // pred_check
      _
    $region11: #{tpu_custom_call.1} parent=1 // pred_check_branch
      %39 = sbr.rel (0) target = $region13
    $region12: #{tpu_custom_call.1} parent=1 // pred_region
      _
    $region13: #{tpu_custom_call.1} parent=1 // pred_fallthru
      _
    // Predicated region
    $region14: #{tpu_custom_call.1} parent=1 // pred_check
      _
    $region15: #{tpu_custom_call.1} parent=1 // pred_check_branch
      %41 = sbr.rel (0) target = $region17
    $region16: #{tpu_custom_call.1} parent=1 // pred_region
      %s43 = ssub.s32 1024, 1024
      %44 = vsyncadd [#allocation6], %s43
      %s45 = sshll.u32 [#allocation7], 4
      %s46 = int_to_ptr.vmem [resolvable:$true] %s45
      %51 = dma.hbm_to_vmem [thread:$0]  %s3, 1024, %s46, [#allocation6], 64, 64, 4
    $region17: #{tpu_custom_call.1} parent=1 // pred_fallthru
      _
    // Predicated region
    $region18: #{tpu_custom_call.1} parent=1 // pred_check
      _
    $region19: #{tpu_custom_call.1} parent=1 // pred_check_branch
      %53 = sbr.rel (0) target = $region21
    $region20: #{tpu_custom_call.1} parent=1 // pred_region
      _
    $region21: #{tpu_custom_call.1} parent=1 // pred_fallthru
      _
    // Predicated region
    $region22: #{tpu_custom_call.1} parent=1 // pred_check
      _
    $region23: #{tpu_custom_call.1} parent=1 // pred_check_branch
      %55 = sbr.rel (0) target = $region25
    $region24: #{tpu_custom_call.1} parent=1 // pred_region
      _
    $region25: #{tpu_custom_call.1} parent=1 // pred_fallthru
      _
    // Predicated region
    $region26: #{tpu_custom_call.1} parent=1 // pred_check
      _
    $region27: #{tpu_custom_call.1} parent=1 // pred_check_branch
      %57 = sbr.rel (0) target = $region29
    $region28: #{tpu_custom_call.1} parent=1 // pred_region
      %58 = dma.done [#allocation3], 448
    $region29: #{tpu_custom_call.1} parent=1 // pred_fallthru
      _
    // Predicated region
    $region30: #{tpu_custom_call.1} parent=1 // pred_check
      _
    $region31: #{tpu_custom_call.1} parent=1 // pred_check_branch
      %60 = sbr.rel (0) target = $region33
    $region32: #{tpu_custom_call.1} parent=1 // pred_region
      %61 = dma.done [#allocation6], 1024
    $region33: #{tpu_custom_call.1} parent=1 // pred_fallthru
      _
    // Predicated region
    $region34: #{tpu_custom_call.1} parent=1 // pred_check
      _
    $region35: #{tpu_custom_call.1} parent=1 // pred_check_branch
      %63 = sbr.rel (0) target = $region37
    $region36: #{tpu_custom_call.1} parent=1 // pred_region
      %64 = dma.done [#allocation6], 1024
    $region37: #{tpu_custom_call.1} parent=1 // pred_fallthru
      _
    %v66 = vld [vmem:[#allocation2] sm:$0xf]
    %v67 = vld [vmem:[#allocation2 + $0x4] sm:$0xf]
    %v68 = vld [vmem:[#allocation2 + $0x8] sm:$0xf]
    %v69 = vld [vmem:[#allocation2 + $0xc] sm:$0xf]
    %v70 = vld [vmem:[#allocation2 + $0x10] sm:$0xf]
    %v71 = vld [vmem:[#allocation2 + $0x14] sm:$0xf]
    %v72 = vld [vmem:[#allocation2 + $0x18] sm:$0xf]
    %v73 = vld [vmem:[#allocation5] sm:$0xf]
    %v74 = vld [vmem:[#allocation5 + $0x4] sm:$0xf]
    %v75 = vld [vmem:[#allocation5 + $0x8] sm:$0xf]
    %v76 = vld [vmem:[#allocation5 + $0xc] sm:$0xf]
    %v77 = vld [vmem:[#allocation5 + $0x10] sm:$0xf]
    %v78 = vld [vmem:[#allocation5 + $0x14] sm:$0xf]
    %v79 = vld [vmem:[#allocation5 + $0x18] sm:$0xf]
    %v80 = vld [vmem:[#allocation5 + $0x1c] sm:$0xf]
    %v81 = vld [vmem:[#allocation5 + $0x20] sm:$0xf]
    %v82 = vld [vmem:[#allocation5 + $0x24] sm:$0xf]
    %v83 = vld [vmem:[#allocation5 + $0x28] sm:$0xf]
    %v84 = vld [vmem:[#allocation5 + $0x2c] sm:$0xf]
    %v85 = vld [vmem:[#allocation5 + $0x30] sm:$0xf]
    %v86 = vld [vmem:[#allocation5 + $0x34] sm:$0xf]
    %v87 = vld [vmem:[#allocation5 + $0x38] sm:$0xf]
    %v88 = vld [vmem:[#allocation5 + $0x3c] sm:$0xf]
    %v96 = vunpack.c.l.b16 %v66
    %v97 = vunpack.c.l.b16 %v67
    %v98 = vunpack.c.l.b16 %v68
    %v99 = vunpack.c.l.b16 %v69
    %v100 = vunpack.c.l.b16 %v70
    %v101 = vunpack.c.l.b16 %v71
    %v102 = vunpack.c.l.b16 %v72
    %v103 = vpack.c.b16 %v97, %v96
    %v104 = vpack.c.b16 %v99, %v98
    %v105 = vpack.c.b16 %v101, %v100
    %v106 = vpack.c.b16 %v102, %v102
    %v127 = vunpack.c.l.b16 %v73
    %v128 = vunpack.c.l.b16 %v74
    %v129 = vunpack.c.l.b16 %v75
    %v130 = vunpack.c.l.b16 %v76
    %v131 = vunpack.c.l.b16 %v77
    %v132 = vunpack.c.l.b16 %v78
    %v133 = vunpack.c.l.b16 %v79
    %v134 = vunpack.c.l.b16 %v80
    %v135 = vunpack.c.l.b16 %v81
    %v136 = vunpack.c.l.b16 %v82
    %v137 = vunpack.c.l.b16 %v83
    %v138 = vunpack.c.l.b16 %v84
    %v139 = vunpack.c.l.b16 %v85
    %v140 = vunpack.c.l.b16 %v86
    %v141 = vunpack.c.l.b16 %v87
    %v142 = vunpack.c.l.b16 %v88
    %v143 = vpack.c.b16 %v128, %v127
    %v144 = vpack.c.b16 %v130, %v129
    %v145 = vpack.c.b16 %v132, %v131
    %v146 = vpack.c.b16 %v134, %v133
    %v147 = vpack.c.b16 %v136, %v135
    %v148 = vpack.c.b16 %v138, %v137
    %v149 = vpack.c.b16 %v140, %v139
    %v150 = vpack.c.b16 %v142, %v141
    %159 = vmatprep.subr.bf16.mxu0 0
    %160 = vmatpush1.bf16.msra.mxu0 %v150
    %161 = vmatprep.subr.bf16.mxu0 0
    %162 = vmatpush1.bf16.msra.mxu0 %v149
    %163 = vmatprep.subr.bf16.mxu0 0
    %164 = vmatpush1.bf16.msra.mxu0 %v148
    %165 = vmatprep.subr.bf16.mxu0 0
    %166 = vmatpush1.bf16.msra.mxu0 %v147
    %167 = vmatprep.subr.bf16.mxu0 0
    %168 = vmatpush1.bf16.msra.mxu0 %v146
    %169 = vmatprep.subr.bf16.mxu0 0
    %170 = vmatpush1.bf16.msra.mxu0 %v145
    %171 = vmatprep.subr.bf16.mxu0 0
    %172 = vmatpush1.bf16.msra.mxu0 %v144
    %173 = vmatprep.subr.bf16.mxu0 0
    %174 = vmatpush1.bf16.msra.mxu0 %v143
    %175 = vmatprep.subr.bf16.mxu0 0
    %176 = vmatpush2.bf16.msra.mxu0 0
    %177 = vmatprep.subr.bf16.mxu0 0
    %178 = vmatpush2.bf16.msra.mxu0 0
    %179 = vmatprep.subr.bf16.mxu0 0
    %180 = vmatpush2.bf16.msra.mxu0 0
    %181 = vmatprep.subr.bf16.mxu0 0
    %182 = vmatpush2.bf16.msra.mxu0 0
    %183 = vmatprep.subr.bf16.mxu0 0
    %184 = vmatpush2.bf16.msra.mxu0 0
    %185 = vmatprep.subr.bf16.mxu0 0
    %186 = vmatpush2.bf16.msra.mxu0 0
    %187 = vmatprep.subr.bf16.mxu0 0
    %188 = vmatpush2.bf16.msra.mxu0 0
    %189 = vmatprep.subr.bf16.mxu0 0
    %190 = vmatpush2.bf16.msra.mxu0 0
    %191 = vmatprep.mubr.bf16.mxu0 0
    %192 = vmatmul.mubr.bf16.gmra.mxu0 %v103
    %v193 = vpop.f32.mrf.mxu0
    %v194 = vadd.f32 0.0, %v193
    %v195 = vpop.f32.mrf.mxu0
    %v196 = vpop.f32.mrf.mxu0
    %v197 = vadd.f32 0.0, %v196
    %v198 = vpop.f32.mrf.mxu0
    %199 = vmatprep.mubr.bf16.mxu0 0
    %200 = vmatmul.mubr.bf16.gmra.mxu0 %v104
    %v201 = vpop.f32.mrf.mxu0
    %v202 = vadd.f32 0.0, %v201
    %v203 = vpop.f32.mrf.mxu0
    %v204 = vpop.f32.mrf.mxu0
    %v205 = vadd.f32 0.0, %v204
    %v206 = vpop.f32.mrf.mxu0
    %207 = vmatprep.mubr.bf16.mxu0 0
    %208 = vmatmul.mubr.bf16.gmra.mxu0 %v105
    %v209 = vpop.f32.mrf.mxu0
    %v210 = vadd.f32 0.0, %v209
    %v211 = vpop.f32.mrf.mxu0
    %v212 = vpop.f32.mrf.mxu0
    %v213 = vadd.f32 0.0, %v212
    %v214 = vpop.f32.mrf.mxu0
    %215 = vmatprep.mubr.bf16.mxu0 0
    %216 = vmatmul.mubr.bf16.gmra.mxu0 %v106
    %v217 = vpop.f32.mrf.mxu0
    %v218 = vadd.f32 0.0, %v217
    %v219 = vpop.f32.mrf.mxu0
    %v220 = vpop.f32.mrf.mxu0
    %v221 = vpop.f32.mrf.mxu0
    %222 = vdwg.mxu0
    %v223 = vld [vmem:[%s5] sm:$0x1]
    %v224 = vld [vmem:[%s5 + $0x1] sm:$0x1]
    %v225 = vld [vmem:[%s5 + $0x2] sm:$0x1]
    %v226 = vld [vmem:[%s5 + $0x3] sm:$0x1]
    %v227 = vld [vmem:[%s5 + $0x4] sm:$0x1]
    %v228 = vld [vmem:[%s5 + $0x5] sm:$0x1]
    %v229 = vld [vmem:[%s5 + $0x6] sm:$0x1]
    %v237 = vlaneseq
    %v238 = vshrl.u32 %v237, 7
    %v239 = vsub.s32 0, %v238
    %v240 = vrot.slane %v223, %v239
    %v241 = vlaneseq
    %v242 = vshrl.u32 %v241, 7
    %v243 = vsub.s32 0, %v242
    %v244 = vrot.slane %v224, %v243
    %v245 = vlaneseq
    %v246 = vshrl.u32 %v245, 7
    %v247 = vsub.s32 0, %v246
    %v248 = vrot.slane %v225, %v247
    %v249 = vlaneseq
    %v250 = vshrl.u32 %v249, 7
    %v251 = vsub.s32 0, %v250
    %v252 = vrot.slane %v226, %v251
    %v253 = vlaneseq
    %v254 = vshrl.u32 %v253, 7
    %v255 = vsub.s32 0, %v254
    %v256 = vrot.slane %v227, %v255
    %v257 = vlaneseq
    %v258 = vshrl.u32 %v257, 7
    %v259 = vsub.s32 0, %v258
    %v260 = vrot.slane %v228, %v259
    %v261 = vlaneseq
    %v262 = vshrl.u32 %v261, 7
    %v263 = vsub.s32 0, %v262
    %v264 = vrot.slane %v229, %v263
    %v272 = vadd.f32 %v194, %v240
    %v273 = vadd.f32 %v197, %v244
    %v274 = vadd.f32 %v202, %v248
    %v275 = vadd.f32 %v205, %v252
    %v276 = vadd.f32 %v210, %v256
    %v277 = vadd.f32 %v213, %v260
    %v278 = vadd.f32 %v218, %v264
    %v279 = vmax.f32 %v272, %v276
    %v280 = vmax.f32 %v273, %v277
    %v281 = vmax.f32 %v274, %v278
    %v282 = vmax.f32 %v279, %v280
    %v283 = vmax.f32 %v281, %v275
    %v284 = vmax.f32 %v282, %v283
    %v285 = vld [vmem:[%s2] sm:$0x1]
    %v287 = vlaneseq
    %v288 = vshrl.u32 %v287, 7
    %v289 = vsub.s32 0, %v288
    %v290 = vrot.slane %v285, %v289
    %v292 = vadd.f32 %v284, %v290
    %v293 = vmax.f32 %v292, 0.0
    %v294 = vpack.c.bf16 %v293, %v293
    %v295 = vld [vmem:[#allocation7] sm:$0xf]
    %v296 = vld [vmem:[#allocation7 + $0x4] sm:$0xf]
    %v297 = vld [vmem:[#allocation7 + $0x8] sm:$0xf]
    %v298 = vld [vmem:[#allocation7 + $0xc] sm:$0xf]
    %v299 = vld [vmem:[#allocation7 + $0x10] sm:$0xf]
    %v300 = vld [vmem:[#allocation7 + $0x14] sm:$0xf]
    %v301 = vld [vmem:[#allocation7 + $0x18] sm:$0xf]
    %v302 = vld [vmem:[#allocation7 + $0x1c] sm:$0xf]
    %v303 = vld [vmem:[#allocation7 + $0x20] sm:$0xf]
    %v304 = vld [vmem:[#allocation7 + $0x24] sm:$0xf]
    %v305 = vld [vmem:[#allocation7 + $0x28] sm:$0xf]
    %v306 = vld [vmem:[#allocation7 + $0x2c] sm:$0xf]
    %v307 = vld [vmem:[#allocation7 + $0x30] sm:$0xf]
    %v308 = vld [vmem:[#allocation7 + $0x34] sm:$0xf]
    %v309 = vld [vmem:[#allocation7 + $0x38] sm:$0xf]
    %v310 = vld [vmem:[#allocation7 + $0x3c] sm:$0xf]
    %v311 = vld [vmem:[%s4] sm:$0x1]
    %v313 = vlaneseq
    %v314 = vshrl.u32 %v313, 7
    %v315 = vsub.s32 0, %v314
    %v316 = vrot.slane %v311, %v315
    %v334 = vunpack.c.l.b16 %v295
    %v335 = vunpack.c.l.b16 %v296
    %v336 = vunpack.c.l.b16 %v297
    %v337 = vunpack.c.l.b16 %v298
    %v338 = vunpack.c.l.b16 %v299
    %v339 = vunpack.c.l.b16 %v300
    %v340 = vunpack.c.l.b16 %v301
    %v341 = vunpack.c.l.b16 %v302
    %v342 = vunpack.c.l.b16 %v303
    %v343 = vunpack.c.l.b16 %v304
    %v344 = vunpack.c.l.b16 %v305
    %v345 = vunpack.c.l.b16 %v306
    %v346 = vunpack.c.l.b16 %v307
    %v347 = vunpack.c.l.b16 %v308
    %v348 = vunpack.c.l.b16 %v309
    %v349 = vunpack.c.l.b16 %v310
    %v350 = vpack.c.b16 %v335, %v334
    %v351 = vpack.c.b16 %v337, %v336
    %v352 = vpack.c.b16 %v339, %v338
    %v353 = vpack.c.b16 %v341, %v340
    %v354 = vpack.c.b16 %v343, %v342
    %v355 = vpack.c.b16 %v345, %v344
    %v356 = vpack.c.b16 %v347, %v346
    %v357 = vpack.c.b16 %v349, %v348
    %366 = vmatprep.subr.bf16.mxu0 0
    %367 = vmatpush1.bf16.msra.mxu0 %v357
    %368 = vmatprep.subr.bf16.mxu0 0
    %369 = vmatpush1.bf16.msra.mxu0 %v356
    %370 = vmatprep.subr.bf16.mxu0 0
    %371 = vmatpush1.bf16.msra.mxu0 %v355
    %372 = vmatprep.subr.bf16.mxu0 0
    %373 = vmatpush1.bf16.msra.mxu0 %v354
    %374 = vmatprep.subr.bf16.mxu0 0
    %375 = vmatpush1.bf16.msra.mxu0 %v353
    %376 = vmatprep.subr.bf16.mxu0 0
    %377 = vmatpush1.bf16.msra.mxu0 %v352
    %378 = vmatprep.subr.bf16.mxu0 0
    %379 = vmatpush1.bf16.msra.mxu0 %v351
    %380 = vmatprep.subr.bf16.mxu0 0
    %381 = vmatpush1.bf16.msra.mxu0 %v350
    %382 = vmatprep.subr.bf16.mxu0 0
    %383 = vmatpush2.bf16.msra.mxu0 0
    %384 = vmatprep.subr.bf16.mxu0 0
    %385 = vmatpush2.bf16.msra.mxu0 0
    %386 = vmatprep.subr.bf16.mxu0 0
    %387 = vmatpush2.bf16.msra.mxu0 0
    %388 = vmatprep.subr.bf16.mxu0 0
    %389 = vmatpush2.bf16.msra.mxu0 0
    %390 = vmatprep.subr.bf16.mxu0 0
    %391 = vmatpush2.bf16.msra.mxu0 0
    %392 = vmatprep.subr.bf16.mxu0 0
    %393 = vmatpush2.bf16.msra.mxu0 0
    %394 = vmatprep.subr.bf16.mxu0 0
    %395 = vmatpush2.bf16.msra.mxu0 0
    %396 = vmatprep.subr.bf16.mxu0 0
    %397 = vmatpush2.bf16.msra.mxu0 0
    %398 = vmatprep.mubr.bf16.mxu0 0
    %399 = vmatmul.mubr.bf16.gmra.mxu0 %v294
    %v400 = vpop.f32.mrf.mxu0
    %v401 = vadd.f32 %v316, %v400
    %v402 = vpop.f32.mrf.mxu0
    %v403 = vpop.f32.mrf.mxu0
    %v404 = vpop.f32.mrf.mxu0
    %405 = vdwg.mxu0
    %406 = vst [vmem:[#allocation8] sm:$0xff] %v401
    // Predicated region
    $region38: #{tpu_custom_call.1} parent=1 // pred_check
      _
    $region39: #{tpu_custom_call.1} parent=1 // pred_check_branch
      %408 = sbr.rel (0) target = $region41
    $region40: #{tpu_custom_call.1} parent=1 // pred_region
      %s410 = ssub.s32 128, 128
      %411 = vsyncadd [#allocation4], %s410
      %s413 = sshll.u32 [#allocation8], 4
      %s414 = int_to_ptr.vmem [resolvable:$true] %s413
      %416 = dma.vmem_to_hbm [thread:$0]  %s414, 128, %s6, [#allocation4]
    $region41: #{tpu_custom_call.1} parent=1 // pred_fallthru
      _
    // Predicated region
    $region42: #{tpu_custom_call.1} parent=1 // pred_check
      _
    $region43: #{tpu_custom_call.1} parent=1 // pred_check_branch
      %418 = sbr.rel (0) target = $region45
    $region44: #{tpu_custom_call.1} parent=1 // pred_region
      %419 = dma.done [#allocation4], 128
    $region45: #{tpu_custom_call.1} parent=1 // pred_fallthru
      _
    %420 = vsyncpa [#allocation3], 1
    %421 = vsyncpa [#allocation6], 1
    %422 = vsyncpa [#allocation4], 1

</llo_original>
